<compile_context>
chip_gen: v5e
topology: v5e:2x2
jax: 0.10.0
libtpu: 0.0.40
codegen_flags: <defaults>
</compile_context>

<pallas_src>
import jax
import jax.numpy as jnp
from jax import lax
from jax.experimental import pallas as pl
from jax.experimental.pallas import tpu as pltpu

NUM_LAYER = 2


def lstm_kernel(x_ref, wih0_ref, whh0_ref, b0_ref,
                w1_ref, b1_ref, wout_ref, bout_ref,
                out_ref, xproj_ref, h1buf_ref):
    """Full 2-layer LSTM recurrence + linear head + relu in one invocation.

    All operands live in VMEM (tiny working set). The time recurrence is an
    unrolled lax.fori_loop carrying (h0, c0, h1, c1).

    Weight preprocessing contract (done in the wrapper):
      * wih0/whh0/b0 and w1/b1 have their i/f/o gate columns scaled by 0.5
        so sigmoid(x) == 0.5*tanh(x_scaled) + 0.5 and tanh(g) == tanh(g)
        come out of ONE full-width tanh + one affine.
      * w1 = concat([wih1, whh1], axis=0): layer-1 gates are one fused dot
        of concat([h0, h1], axis=1) @ w1 + b1.
    """
    seq_len = x_ref.shape[0]
    four_h = whh0_ref.shape[1]
    hidden = four_h // 4

    # Hoist recurrent weight loads out of the time loop.
    whh0 = whh0_ref[...]
    w1 = w1_ref[...]
    b1 = b1_ref[...]

    # Gate-recovery affine, hoisted: alpha = [.5,.5,1,.5] per gate block,
    # beta = [.5,.5,0,.5]. Built once from a lane iota (cheap VPU work).
    lane = lax.broadcasted_iota(jnp.int32, (1, four_h), 1)
    is_g = (lane >= 2 * hidden) & (lane < 3 * hidden)
    alpha = jnp.where(is_g, 1.0, 0.5).astype(jnp.float32)
    beta = jnp.where(is_g, 0.0, 0.5).astype(jnp.float32)

    # Precompute the layer-0 input projection for all timesteps with a single
    # M=seq_len matmul (off the serial per-step path). b0 already folded in.
    xproj_ref[...] = (jnp.dot(x_ref[...], wih0_ref[...],
                              preferred_element_type=jnp.float32)
                      + b0_ref[...])

    def act(g_scaled):
        # ONE tanh over the full (1, 4H) gate vector; i/f/o recovered via the
        # precomputed affine (their pre-activations were pre-scaled by 0.5),
        # g (cell gate) passes through with alpha=1, beta=0.
        a = alpha * jnp.tanh(g_scaled) + beta
        i = a[:, 0 * hidden:1 * hidden]
        f = a[:, 1 * hidden:2 * hidden]
        g = a[:, 2 * hidden:3 * hidden]
        o = a[:, 3 * hidden:4 * hidden]
        return i, f, g, o

    def body(t, carry):
        h0, c0, h1, c1 = carry
        # Layer 0: precomputed input projection + recurrent matmul.
        g0 = xproj_ref[pl.ds(t, 1), :] + jnp.dot(
            h0, whh0, preferred_element_type=jnp.float32)
        i0, f0, gg0, o0 = act(g0)
        c0 = f0 * c0 + i0 * gg0
        h0 = o0 * jnp.tanh(c0)
        # Layer 1: single fused (1, 2H) x (2H, 4H) matmul for both the input
        # and recurrent contributions (one MXU push/pop instead of two + add).
        s1 = jnp.concatenate([h0, h1], axis=1)
        g1 = jnp.dot(s1, w1, preferred_element_type=jnp.float32) + b1
        i1, f1, gg1, o1 = act(g1)
        c1 = f1 * c1 + i1 * gg1
        h1 = o1 * jnp.tanh(c1)
        # Buffer h1; the output projection + store are deferred past the loop.
        h1buf_ref[pl.ds(t, 1), :] = h1
        return h0, c0, h1, c1

    zeros = jnp.zeros((1, hidden), jnp.float32)
    # seq_len is static: fully unroll while small for scheduler visibility;
    # partial unroll if it ever grows (avoids instruction-memory blowup).
    unroll = True if seq_len <= 64 else 8
    lax.fori_loop(0, seq_len, body, (zeros, zeros, zeros, zeros),
                  unroll=unroll)

    # Single deferred output projection + ReLU + one store (no per-step
    # lane-width-1 masked stores).
    pred = (jnp.dot(h1buf_ref[...], wout_ref[...],
                    preferred_element_type=jnp.float32)
            + bout_ref[...])
    out_ref[...] = jnp.maximum(pred, 0.0)


def _scale_ifo_columns(w, hidden):
    """Scale the i/f/o gate columns (not g) of a (..., 4H) array by 0.5."""
    scale = jnp.concatenate([
        jnp.full((2 * hidden,), 0.5, jnp.float32),   # i, f
        jnp.ones((hidden,), jnp.float32),            # g
        jnp.full((hidden,), 0.5, jnp.float32),       # o
    ])
    return w * scale[None, :]


@jax.jit
def lstm_forward(x, params):
    """x: (seq_len, input_size) float32. Returns (seq_len, output_size) f32."""
    (wih0, whh0, b0, wih1, whh1, b1, wout, bout) = params
    seq_len = x.shape[0]
    hidden = whh0.shape[0]
    out_size = wout.shape[1]

    # Host/XLA-side weight prep (outside the kernel, fused by XLA):
    #  * scale i/f/o gate columns by 0.5 (single-tanh activation trick),
    #  * stack layer-1 input+recurrent weights for the fused matmul.
    wih0_s = _scale_ifo_columns(wih0, hidden)
    whh0_s = _scale_ifo_columns(whh0, hidden)
    b0_s = _scale_ifo_columns(b0, hidden)
    w1_s = _scale_ifo_columns(jnp.concatenate([wih1, whh1], axis=0), hidden)
    b1_s = _scale_ifo_columns(b1, hidden)

    vmem = pl.BlockSpec(memory_space=pltpu.MemorySpace.VMEM)
    return pl.pallas_call(
        lstm_kernel,
        out_shape=jax.ShapeDtypeStruct((seq_len, out_size), jnp.float32),
        in_specs=[vmem] * 8,
        out_specs=vmem,
        scratch_shapes=[
            pltpu.VMEM((seq_len, 4 * hidden), jnp.float32),   # xproj (layer-0)
            pltpu.VMEM((seq_len, hidden), jnp.float32),       # h1 buffer
        ],
    )(x, wih0_s, whh0_s, b0_s, w1_s, b1_s, wout, bout)


def make_params(key, input_size, hidden_size, output_size):
    """Deterministic synthetic parameters, PyTorch-style uniform init.

    Stored pre-transposed: w_ih_l0 -> (input_size, 4H), w_hh -> (H, 4H),
    biases pre-summed (b_ih + b_hh) -> (1, 4H). Gate order: i, f, g, o.
    """
    k = 1.0 / jnp.sqrt(hidden_size)
    keys = jax.random.split(key, 10)

    def u(k_, shape):
        return jax.random.uniform(k_, shape, jnp.float32, -k, k)

    wih0 = u(keys[0], (input_size, 4 * hidden_size))
    whh0 = u(keys[1], (hidden_size, 4 * hidden_size))
    b0 = u(keys[2], (1, 4 * hidden_size)) + u(keys[3], (1, 4 * hidden_size))
    wih1 = u(keys[4], (hidden_size, 4 * hidden_size))
    whh1 = u(keys[5], (hidden_size, 4 * hidden_size))
    b1 = u(keys[6], (1, 4 * hidden_size)) + u(keys[7], (1, 4 * hidden_size))
    wout = u(keys[8], (hidden_size, output_size))
    bout = u(keys[9], (1, output_size))
    return (wih0, whh0, b0, wih1, whh1, b1, wout, bout)


def lstm_reference(x, params):
    """Pure-JAX reference of the same forward pass (for validation)."""
    (wih0, whh0, b0, wih1, whh1, b1, wout, bout) = params
    hidden = whh0.shape[0]

    def cell(x_t, h, c, wih, whh, b):
        g = x_t @ wih + h @ whh + b
        i = jax.nn.sigmoid(g[:, 0 * hidden:1 * hidden])
        f = jax.nn.sigmoid(g[:, 1 * hidden:2 * hidden])
        gg = jnp.tanh(g[:, 2 * hidden:3 * hidden])
        o = jax.nn.sigmoid(g[:, 3 * hidden:4 * hidden])
        c = f * c + i * gg
        h = o * jnp.tanh(c)
        return h, c

    def step(carry, x_t):
        h0, c0, h1, c1 = carry
        h0, c0 = cell(x_t[None, :], h0, c0, wih0, whh0, b0)
        h1, c1 = cell(h0, h1, c1, wih1, whh1, b1)
        pred = jnp.maximum(h1 @ wout + bout, 0.0)
        return (h0, c0, h1, c1), pred[0]

    z = jnp.zeros((1, hidden), jnp.float32)
    _, preds = lax.scan(step, (z, z, z, z), x)
    return preds


if __name__ == "__main__":
    # Small shapes consistent with the module's forward:
    # input_seq (seq_len, batch=1, input_size) -> here seq=8, input=16, hidden=32.
    seq_len, input_size, hidden_size, output_size = 8, 16, 32, 1

    key = jax.random.PRNGKey(0)
    k_x, k_p = jax.random.split(key)
    x_seq = jax.random.normal(k_x, (seq_len, 1, input_size), jnp.float32)
    params = make_params(k_p, input_size, hidden_size, output_size)

    # PyTorch forward squeezes the batch=1 dim before the linear head;
    # the kernel consumes the squeezed (seq_len, input_size) layout directly.
    x2d = jnp.squeeze(x_seq, axis=1)

    out = lstm_forward(x2d, params)
    out = jax.block_until_ready(out)

    ref = lstm_reference(x2d, params)
    assert out.shape == (seq_len, output_size)
    # Tolerance covers the tanh-identity sigmoid with pre-scaled gate weights.
    assert jnp.allclose(out, ref, atol=5e-5, rtol=1e-4), (out, ref)

    print("KERNEL_OK")
</pallas_src>

<mosaic_0001>
module attributes {stable_mosaic.version = 11 : i64} {
  func.func @lstm_kernel(%arg0: memref<8x16xf32, #tpu.memory_space<vmem>>, %arg1: memref<16x128xf32, #tpu.memory_space<vmem>>, %arg2: memref<32x128xf32, #tpu.memory_space<vmem>>, %arg3: memref<1x128xf32, #tpu.memory_space<vmem>>, %arg4: memref<64x128xf32, #tpu.memory_space<vmem>>, %arg5: memref<1x128xf32, #tpu.memory_space<vmem>>, %arg6: memref<32x1xf32, #tpu.memory_space<vmem>>, %arg7: memref<1x1xf32, #tpu.memory_space<vmem>>, %arg8: memref<8x1xf32, #tpu.memory_space<vmem>>, %arg9: memref<8x128xf32, #tpu.memory_space<vmem>>, %arg10: memref<8x32xf32, #tpu.memory_space<vmem>>) attributes {dimension_semantics = [], scalar_prefetch = 0 : i64, scratch_operands = 2 : i64, tpu.core_type = #tpu.core_type<tc>} {
    %c0 = arith.constant 0 : index
    %c0_0 = arith.constant 0 : index
    %0 = vector.load %arg2[%c0, %c0_0] : memref<32x128xf32, #tpu.memory_space<vmem>>, vector<32x128xf32>
    %c0_1 = arith.constant 0 : index
    %c0_2 = arith.constant 0 : index
    %1 = vector.load %arg4[%c0_1, %c0_2] : memref<64x128xf32, #tpu.memory_space<vmem>>, vector<64x128xf32>
    %c0_3 = arith.constant 0 : index
    %c0_4 = arith.constant 0 : index
    %2 = vector.load %arg5[%c0_3, %c0_4] : memref<1x128xf32, #tpu.memory_space<vmem>>, vector<1x128xf32>
    %3 = tpu.iota {dimensions = array<i32: 1>} : vector<1x128xi32>
    %c64_i32 = arith.constant 64 : i32
    %4 = vector.broadcast %c64_i32 : i32 to vector<1x128xi32>
    %5 = arith.cmpi sge, %3, %4 : vector<1x128xi32>
    %c96_i32 = arith.constant 96 : i32
    %6 = vector.broadcast %c96_i32 : i32 to vector<1x128xi32>
    %7 = arith.cmpi slt, %3, %6 : vector<1x128xi32>
    %8 = arith.andi %5, %7 : vector<1x128xi1>
    %cst = arith.constant 1.000000e+00 : f32
    %cst_5 = arith.constant 5.000000e-01 : f32
    %9 = vector.broadcast %cst : f32 to vector<1x128xf32>
    %10 = vector.broadcast %cst_5 : f32 to vector<1x128xf32>
    %11 = arith.select %8, %9, %10 : vector<1x128xi1>, vector<1x128xf32>
    %cst_6 = arith.constant 0.000000e+00 : f32
    %cst_7 = arith.constant 5.000000e-01 : f32
    %12 = vector.broadcast %cst_6 : f32 to vector<1x128xf32>
    %13 = vector.broadcast %cst_7 : f32 to vector<1x128xf32>
    %14 = arith.select %8, %12, %13 : vector<1x128xi1>, vector<1x128xf32>
    %c0_8 = arith.constant 0 : index
    %c0_9 = arith.constant 0 : index
    %15 = vector.load %arg0[%c0_8, %c0_9] : memref<8x16xf32, #tpu.memory_space<vmem>>, vector<8x16xf32>
    %c0_10 = arith.constant 0 : index
    %c0_11 = arith.constant 0 : index
    %16 = vector.load %arg1[%c0_10, %c0_11] : memref<16x128xf32, #tpu.memory_space<vmem>>, vector<16x128xf32>
    %cst_12 = arith.constant dense<0.000000e+00> : vector<8x128xf32>
    %17 = tpu.matmul %15, %16, %cst_12 {dimension_numbers = #tpu.dot_dimension_numbers<[1], [0], [0], [1], [0, 0, 1, 1], [], []>} : vector<8x16xf32>, vector<16x128xf32>, vector<8x128xf32> -> vector<8x128xf32>
    %c0_13 = arith.constant 0 : index
    %c0_14 = arith.constant 0 : index
    %18 = vector.load %arg3[%c0_13, %c0_14] : memref<1x128xf32, #tpu.memory_space<vmem>>, vector<1x128xf32>
    %19 = vector.broadcast %18 : vector<1x128xf32> to vector<8x128xf32>
    %20 = arith.addf %17, %19 : vector<8x128xf32>
    %c0_15 = arith.constant 0 : index
    %c0_16 = arith.constant 0 : index
    %21 = vector.load %arg9[%c0_15, %c0_16] : memref<8x128xf32, #tpu.memory_space<vmem>>, vector<8x128xf32>
    tpu.vector_store %arg9[%c0_15, %c0_16], %20 {strides = array<i32>} : memref<8x128xf32, #tpu.memory_space<vmem>>, vector<8x128xf32>,
    %cst_17 = arith.constant 0.000000e+00 : f32
    %22 = vector.broadcast %cst_17 : f32 to vector<1x32xf32>
    %c0_i32 = arith.constant 0 : i32
    %23 = arith.index_cast %c0_i32 : i32 to index
    %c0_18 = arith.constant 0 : index
    %24 = vector.load %arg9[%23, %c0_18] : memref<8x128xf32, #tpu.memory_space<vmem>>, vector<1x128xf32>
    %cst_19 = arith.constant dense<0.000000e+00> : vector<1x128xf32>
    %25 = tpu.matmul %22, %0, %cst_19 {dimension_numbers = #tpu.dot_dimension_numbers<[1], [0], [0], [1], [0, 0, 1, 1], [], []>} : vector<1x32xf32>, vector<32x128xf32>, vector<1x128xf32> -> vector<1x128xf32>
    %26 = arith.addf %24, %25 : vector<1x128xf32>
    %27 = math.tanh %26 : vector<1x128xf32>
    %28 = arith.mulf %11, %27 : vector<1x128xf32>
    %29 = arith.addf %28, %14 : vector<1x128xf32>
    %30 = vector.extract_strided_slice %29 {offsets = [0, 0], sizes = [1, 32], strides = [1, 1]} : vector<1x128xf32> to vector<1x32xf32>
    %31 = vector.extract_strided_slice %29 {offsets = [0, 32], sizes = [1, 32], strides = [1, 1]} : vector<1x128xf32> to vector<1x32xf32>
    %32 = vector.extract_strided_slice %29 {offsets = [0, 64], sizes = [1, 32], strides = [1, 1]} : vector<1x128xf32> to vector<1x32xf32>
    %33 = vector.extract_strided_slice %29 {offsets = [0, 96], sizes = [1, 32], strides = [1, 1]} : vector<1x128xf32> to vector<1x32xf32>
    %34 = arith.mulf %31, %22 : vector<1x32xf32>
    %35 = arith.mulf %30, %32 : vector<1x32xf32>
    %36 = arith.addf %34, %35 : vector<1x32xf32>
    %37 = math.tanh %36 : vector<1x32xf32>
    %38 = arith.mulf %33, %37 : vector<1x32xf32>
    %39 = tpu.concatenate %38, %22 in 1 : vector<1x32xf32>, vector<1x32xf32> -> vector<1x64xf32>
    %cst_20 = arith.constant dense<0.000000e+00> : vector<1x128xf32>
    %40 = tpu.matmul %39, %1, %cst_20 {dimension_numbers = #tpu.dot_dimension_numbers<[1], [0], [0], [1], [0, 0, 1, 1], [], []>} : vector<1x64xf32>, vector<64x128xf32>, vector<1x128xf32> -> vector<1x128xf32>
    %41 = arith.addf %40, %2 : vector<1x128xf32>
    %42 = math.tanh %41 : vector<1x128xf32>
    %43 = arith.mulf %11, %42 : vector<1x128xf32>
    %44 = arith.addf %43, %14 : vector<1x128xf32>
    %45 = vector.extract_strided_slice %44 {offsets = [0, 0], sizes = [1, 32], strides = [1, 1]} : vector<1x128xf32> to vector<1x32xf32>
    %46 = vector.extract_strided_slice %44 {offsets = [0, 32], sizes = [1, 32], strides = [1, 1]} : vector<1x128xf32> to vector<1x32xf32>
    %47 = vector.extract_strided_slice %44 {offsets = [0, 64], sizes = [1, 32], strides = [1, 1]} : vector<1x128xf32> to vector<1x32xf32>
    %48 = vector.extract_strided_slice %44 {offsets = [0, 96], sizes = [1, 32], strides = [1, 1]} : vector<1x128xf32> to vector<1x32xf32>
    %49 = arith.mulf %46, %22 : vector<1x32xf32>
    %50 = arith.mulf %45, %47 : vector<1x32xf32>
    %51 = arith.addf %49, %50 : vector<1x32xf32>
    %52 = math.tanh %51 : vector<1x32xf32>
    %53 = arith.mulf %48, %52 : vector<1x32xf32>
    %54 = arith.index_cast %c0_i32 : i32 to index
    %c0_21 = arith.constant 0 : index
    %55 = vector.load %arg10[%54, %c0_21] : memref<8x32xf32, #tpu.memory_space<vmem>>, vector<1x32xf32>
    tpu.vector_store %arg10[%54, %c0_21], %53 {strides = array<i32>} : memref<8x32xf32, #tpu.memory_space<vmem>>, vector<1x32xf32>,
    %c1_i32 = arith.constant 1 : i32
    %56 = arith.index_cast %c1_i32 : i32 to index
    %c0_22 = arith.constant 0 : index
    %57 = vector.load %arg9[%56, %c0_22] : memref<8x128xf32, #tpu.memory_space<vmem>>, vector<1x128xf32>
    %cst_23 = arith.constant dense<0.000000e+00> : vector<1x128xf32>
    %58 = tpu.matmul %38, %0, %cst_23 {dimension_numbers = #tpu.dot_dimension_numbers<[1], [0], [0], [1], [0, 0, 1, 1], [], []>} : vector<1x32xf32>, vector<32x128xf32>, vector<1x128xf32> -> vector<1x128xf32>
    %59 = arith.addf %57, %58 : vector<1x128xf32>
    %60 = math.tanh %59 : vector<1x128xf32>
    %61 = arith.mulf %11, %60 : vector<1x128xf32>
    %62 = arith.addf %61, %14 : vector<1x128xf32>
    %63 = vector.extract_strided_slice %62 {offsets = [0, 0], sizes = [1, 32], strides = [1, 1]} : vector<1x128xf32> to vector<1x32xf32>
    %64 = vector.extract_strided_slice %62 {offsets = [0, 32], sizes = [1, 32], strides = [1, 1]} : vector<1x128xf32> to vector<1x32xf32>
    %65 = vector.extract_strided_slice %62 {offsets = [0, 64], sizes = [1, 32], strides = [1, 1]} : vector<1x128xf32> to vector<1x32xf32>
    %66 = vector.extract_strided_slice %62 {offsets = [0, 96], sizes = [1, 32], strides = [1, 1]} : vector<1x128xf32> to vector<1x32xf32>
    %67 = arith.mulf %64, %36 : vector<1x32xf32>
    %68 = arith.mulf %63, %65 : vector<1x32xf32>
    %69 = arith.addf %67, %68 : vector<1x32xf32>
    %70 = math.tanh %69 : vector<1x32xf32>
    %71 = arith.mulf %66, %70 : vector<1x32xf32>
    %72 = tpu.concatenate %71, %53 in 1 : vector<1x32xf32>, vector<1x32xf32> -> vector<1x64xf32>
    %cst_24 = arith.constant dense<0.000000e+00> : vector<1x128xf32>
    %73 = tpu.matmul %72, %1, %cst_24 {dimension_numbers = #tpu.dot_dimension_numbers<[1], [0], [0], [1], [0, 0, 1, 1], [], []>} : vector<1x64xf32>, vector<64x128xf32>, vector<1x128xf32> -> vector<1x128xf32>
    %74 = arith.addf %73, %2 : vector<1x128xf32>
    %75 = math.tanh %74 : vector<1x128xf32>
    %76 = arith.mulf %11, %75 : vector<1x128xf32>
    %77 = arith.addf %76, %14 : vector<1x128xf32>
    %78 = vector.extract_strided_slice %77 {offsets = [0, 0], sizes = [1, 32], strides = [1, 1]} : vector<1x128xf32> to vector<1x32xf32>
    %79 = vector.extract_strided_slice %77 {offsets = [0, 32], sizes = [1, 32], strides = [1, 1]} : vector<1x128xf32> to vector<1x32xf32>
    %80 = vector.extract_strided_slice %77 {offsets = [0, 64], sizes = [1, 32], strides = [1, 1]} : vector<1x128xf32> to vector<1x32xf32>
    %81 = vector.extract_strided_slice %77 {offsets = [0, 96], sizes = [1, 32], strides = [1, 1]} : vector<1x128xf32> to vector<1x32xf32>
    %82 = arith.mulf %79, %51 : vector<1x32xf32>
    %83 = arith.mulf %78, %80 : vector<1x32xf32>
    %84 = arith.addf %82, %83 : vector<1x32xf32>
    %85 = math.tanh %84 : vector<1x32xf32>
    %86 = arith.mulf %81, %85 : vector<1x32xf32>
    %87 = arith.index_cast %c1_i32 : i32 to index
    %c0_25 = arith.constant 0 : index
    %88 = vector.load %arg10[%87, %c0_25] : memref<8x32xf32, #tpu.memory_space<vmem>>, vector<1x32xf32>
    tpu.vector_store %arg10[%87, %c0_25], %86 {strides = array<i32>} : memref<8x32xf32, #tpu.memory_space<vmem>>, vector<1x32xf32>,
    %c2_i32 = arith.constant 2 : i32
    %89 = arith.index_cast %c2_i32 : i32 to index
    %c0_26 = arith.constant 0 : index
    %90 = vector.load %arg9[%89, %c0_26] : memref<8x128xf32, #tpu.memory_space<vmem>>, vector<1x128xf32>
    %cst_27 = arith.constant dense<0.000000e+00> : vector<1x128xf32>
    %91 = tpu.matmul %71, %0, %cst_27 {dimension_numbers = #tpu.dot_dimension_numbers<[1], [0], [0], [1], [0, 0, 1, 1], [], []>} : vector<1x32xf32>, vector<32x128xf32>, vector<1x128xf32> -> vector<1x128xf32>
    %92 = arith.addf %90, %91 : vector<1x128xf32>
    %93 = math.tanh %92 : vector<1x128xf32>
    %94 = arith.mulf %11, %93 : vector<1x128xf32>
    %95 = arith.addf %94, %14 : vector<1x128xf32>
    %96 = vector.extract_strided_slice %95 {offsets = [0, 0], sizes = [1, 32], strides = [1, 1]} : vector<1x128xf32> to vector<1x32xf32>
    %97 = vector.extract_strided_slice %95 {offsets = [0, 32], sizes = [1, 32], strides = [1, 1]} : vector<1x128xf32> to vector<1x32xf32>
    %98 = vector.extract_strided_slice %95 {offsets = [0, 64], sizes = [1, 32], strides = [1, 1]} : vector<1x128xf32> to vector<1x32xf32>
    %99 = vector.extract_strided_slice %95 {offsets = [0, 96], sizes = [1, 32], strides = [1, 1]} : vector<1x128xf32> to vector<1x32xf32>
    %100 = arith.mulf %97, %69 : vector<1x32xf32>
    %101 = arith.mulf %96, %98 : vector<1x32xf32>
    %102 = arith.addf %100, %101 : vector<1x32xf32>
    %103 = math.tanh %102 : vector<1x32xf32>
    %104 = arith.mulf %99, %103 : vector<1x32xf32>
    %105 = tpu.concatenate %104, %86 in 1 : vector<1x32xf32>, vector<1x32xf32> -> vector<1x64xf32>
    %cst_28 = arith.constant dense<0.000000e+00> : vector<1x128xf32>
    %106 = tpu.matmul %105, %1, %cst_28 {dimension_numbers = #tpu.dot_dimension_numbers<[1], [0], [0], [1], [0, 0, 1, 1], [], []>} : vector<1x64xf32>, vector<64x128xf32>, vector<1x128xf32> -> vector<1x128xf32>
    %107 = arith.addf %106, %2 : vector<1x128xf32>
    %108 = math.tanh %107 : vector<1x128xf32>
    %109 = arith.mulf %11, %108 : vector<1x128xf32>
    %110 = arith.addf %109, %14 : vector<1x128xf32>
    %111 = vector.extract_strided_slice %110 {offsets = [0, 0], sizes = [1, 32], strides = [1, 1]} : vector<1x128xf32> to vector<1x32xf32>
    %112 = vector.extract_strided_slice %110 {offsets = [0, 32], sizes = [1, 32], strides = [1, 1]} : vector<1x128xf32> to vector<1x32xf32>
    %113 = vector.extract_strided_slice %110 {offsets = [0, 64], sizes = [1, 32], strides = [1, 1]} : vector<1x128xf32> to vector<1x32xf32>
    %114 = vector.extract_strided_slice %110 {offsets = [0, 96], sizes = [1, 32], strides = [1, 1]} : vector<1x128xf32> to vector<1x32xf32>
    %115 = arith.mulf %112, %84 : vector<1x32xf32>
    %116 = arith.mulf %111, %113 : vector<1x32xf32>
    %117 = arith.addf %115, %116 : vector<1x32xf32>
    %118 = math.tanh %117 : vector<1x32xf32>
    %119 = arith.mulf %114, %118 : vector<1x32xf32>
    %120 = arith.index_cast %c2_i32 : i32 to index
    %c0_29 = arith.constant 0 : index
    %121 = vector.load %arg10[%120, %c0_29] : memref<8x32xf32, #tpu.memory_space<vmem>>, vector<1x32xf32>
    tpu.vector_store %arg10[%120, %c0_29], %119 {strides = array<i32>} : memref<8x32xf32, #tpu.memory_space<vmem>>, vector<1x32xf32>,
    %c3_i32 = arith.constant 3 : i32
    %122 = arith.index_cast %c3_i32 : i32 to index
    %c0_30 = arith.constant 0 : index
    %123 = vector.load %arg9[%122, %c0_30] : memref<8x128xf32, #tpu.memory_space<vmem>>, vector<1x128xf32>
    %cst_31 = arith.constant dense<0.000000e+00> : vector<1x128xf32>
    %124 = tpu.matmul %104, %0, %cst_31 {dimension_numbers = #tpu.dot_dimension_numbers<[1], [0], [0], [1], [0, 0, 1, 1], [], []>} : vector<1x32xf32>, vector<32x128xf32>, vector<1x128xf32> -> vector<1x128xf32>
    %125 = arith.addf %123, %124 : vector<1x128xf32>
    %126 = math.tanh %125 : vector<1x128xf32>
    %127 = arith.mulf %11, %126 : vector<1x128xf32>
    %128 = arith.addf %127, %14 : vector<1x128xf32>
    %129 = vector.extract_strided_slice %128 {offsets = [0, 0], sizes = [1, 32], strides = [1, 1]} : vector<1x128xf32> to vector<1x32xf32>
    %130 = vector.extract_strided_slice %128 {offsets = [0, 32], sizes = [1, 32], strides = [1, 1]} : vector<1x128xf32> to vector<1x32xf32>
    %131 = vector.extract_strided_slice %128 {offsets = [0, 64], sizes = [1, 32], strides = [1, 1]} : vector<1x128xf32> to vector<1x32xf32>
    %132 = vector.extract_strided_slice %128 {offsets = [0, 96], sizes = [1, 32], strides = [1, 1]} : vector<1x128xf32> to vector<1x32xf32>
    %133 = arith.mulf %130, %102 : vector<1x32xf32>
    %134 = arith.mulf %129, %131 : vector<1x32xf32>
    %135 = arith.addf %133, %134 : vector<1x32xf32>
    %136 = math.tanh %135 : vector<1x32xf32>
    %137 = arith.mulf %132, %136 : vector<1x32xf32>
    %138 = tpu.concatenate %137, %119 in 1 : vector<1x32xf32>, vector<1x32xf32> -> vector<1x64xf32>
    %cst_32 = arith.constant dense<0.000000e+00> : vector<1x128xf32>
    %139 = tpu.matmul %138, %1, %cst_32 {dimension_numbers = #tpu.dot_dimension_numbers<[1], [0], [0], [1], [0, 0, 1, 1], [], []>} : vector<1x64xf32>, vector<64x128xf32>, vector<1x128xf32> -> vector<1x128xf32>
    %140 = arith.addf %139, %2 : vector<1x128xf32>
    %141 = math.tanh %140 : vector<1x128xf32>
    %142 = arith.mulf %11, %141 : vector<1x128xf32>
    %143 = arith.addf %142, %14 : vector<1x128xf32>
    %144 = vector.extract_strided_slice %143 {offsets = [0, 0], sizes = [1, 32], strides = [1, 1]} : vector<1x128xf32> to vector<1x32xf32>
    %145 = vector.extract_strided_slice %143 {offsets = [0, 32], sizes = [1, 32], strides = [1, 1]} : vector<1x128xf32> to vector<1x32xf32>
    %146 = vector.extract_strided_slice %143 {offsets = [0, 64], sizes = [1, 32], strides = [1, 1]} : vector<1x128xf32> to vector<1x32xf32>
    %147 = vector.extract_strided_slice %143 {offsets = [0, 96], sizes = [1, 32], strides = [1, 1]} : vector<1x128xf32> to vector<1x32xf32>
    %148 = arith.mulf %145, %117 : vector<1x32xf32>
    %149 = arith.mulf %144, %146 : vector<1x32xf32>
    %150 = arith.addf %148, %149 : vector<1x32xf32>
    %151 = math.tanh %150 : vector<1x32xf32>
    %152 = arith.mulf %147, %151 : vector<1x32xf32>
    %153 = arith.index_cast %c3_i32 : i32 to index
    %c0_33 = arith.constant 0 : index
    %154 = vector.load %arg10[%153, %c0_33] : memref<8x32xf32, #tpu.memory_space<vmem>>, vector<1x32xf32>
    tpu.vector_store %arg10[%153, %c0_33], %152 {strides = array<i32>} : memref<8x32xf32, #tpu.memory_space<vmem>>, vector<1x32xf32>,
    %c4_i32 = arith.constant 4 : i32
    %155 = arith.index_cast %c4_i32 : i32 to index
    %c0_34 = arith.constant 0 : index
    %156 = vector.load %arg9[%155, %c0_34] : memref<8x128xf32, #tpu.memory_space<vmem>>, vector<1x128xf32>
    %cst_35 = arith.constant dense<0.000000e+00> : vector<1x128xf32>
    %157 = tpu.matmul %137, %0, %cst_35 {dimension_numbers = #tpu.dot_dimension_numbers<[1], [0], [0], [1], [0, 0, 1, 1], [], []>} : vector<1x32xf32>, vector<32x128xf32>, vector<1x128xf32> -> vector<1x128xf32>
    %158 = arith.addf %156, %157 : vector<1x128xf32>
    %159 = math.tanh %158 : vector<1x128xf32>
    %160 = arith.mulf %11, %159 : vector<1x128xf32>
    %161 = arith.addf %160, %14 : vector<1x128xf32>
    %162 = vector.extract_strided_slice %161 {offsets = [0, 0], sizes = [1, 32], strides = [1, 1]} : vector<1x128xf32> to vector<1x32xf32>
    %163 = vector.extract_strided_slice %161 {offsets = [0, 32], sizes = [1, 32], strides = [1, 1]} : vector<1x128xf32> to vector<1x32xf32>
    %164 = vector.extract_strided_slice %161 {offsets = [0, 64], sizes = [1, 32], strides = [1, 1]} : vector<1x128xf32> to vector<1x32xf32>
    %165 = vector.extract_strided_slice %161 {offsets = [0, 96], sizes = [1, 32], strides = [1, 1]} : vector<1x128xf32> to vector<1x32xf32>
    %166 = arith.mulf %163, %135 : vector<1x32xf32>
    %167 = arith.mulf %162, %164 : vector<1x32xf32>
    %168 = arith.addf %166, %167 : vector<1x32xf32>
    %169 = math.tanh %168 : vector<1x32xf32>
    %170 = arith.mulf %165, %169 : vector<1x32xf32>
    %171 = tpu.concatenate %170, %152 in 1 : vector<1x32xf32>, vector<1x32xf32> -> vector<1x64xf32>
    %cst_36 = arith.constant dense<0.000000e+00> : vector<1x128xf32>
    %172 = tpu.matmul %171, %1, %cst_36 {dimension_numbers = #tpu.dot_dimension_numbers<[1], [0], [0], [1], [0, 0, 1, 1], [], []>} : vector<1x64xf32>, vector<64x128xf32>, vector<1x128xf32> -> vector<1x128xf32>
    %173 = arith.addf %172, %2 : vector<1x128xf32>
    %174 = math.tanh %173 : vector<1x128xf32>
    %175 = arith.mulf %11, %174 : vector<1x128xf32>
    %176 = arith.addf %175, %14 : vector<1x128xf32>
    %177 = vector.extract_strided_slice %176 {offsets = [0, 0], sizes = [1, 32], strides = [1, 1]} : vector<1x128xf32> to vector<1x32xf32>
    %178 = vector.extract_strided_slice %176 {offsets = [0, 32], sizes = [1, 32], strides = [1, 1]} : vector<1x128xf32> to vector<1x32xf32>
    %179 = vector.extract_strided_slice %176 {offsets = [0, 64], sizes = [1, 32], strides = [1, 1]} : vector<1x128xf32> to vector<1x32xf32>
    %180 = vector.extract_strided_slice %176 {offsets = [0, 96], sizes = [1, 32], strides = [1, 1]} : vector<1x128xf32> to vector<1x32xf32>
    %181 = arith.mulf %178, %150 : vector<1x32xf32>
    %182 = arith.mulf %177, %179 : vector<1x32xf32>
    %183 = arith.addf %181, %182 : vector<1x32xf32>
    %184 = math.tanh %183 : vector<1x32xf32>
    %185 = arith.mulf %180, %184 : vector<1x32xf32>
    %186 = arith.index_cast %c4_i32 : i32 to index
    %c0_37 = arith.constant 0 : index
    %187 = vector.load %arg10[%186, %c0_37] : memref<8x32xf32, #tpu.memory_space<vmem>>, vector<1x32xf32>
    tpu.vector_store %arg10[%186, %c0_37], %185 {strides = array<i32>} : memref<8x32xf32, #tpu.memory_space<vmem>>, vector<1x32xf32>,
    %c5_i32 = arith.constant 5 : i32
    %188 = arith.index_cast %c5_i32 : i32 to index
    %c0_38 = arith.constant 0 : index
    %189 = vector.load %arg9[%188, %c0_38] : memref<8x128xf32, #tpu.memory_space<vmem>>, vector<1x128xf32>
    %cst_39 = arith.constant dense<0.000000e+00> : vector<1x128xf32>
    %190 = tpu.matmul %170, %0, %cst_39 {dimension_numbers = #tpu.dot_dimension_numbers<[1], [0], [0], [1], [0, 0, 1, 1], [], []>} : vector<1x32xf32>, vector<32x128xf32>, vector<1x128xf32> -> vector<1x128xf32>
    %191 = arith.addf %189, %190 : vector<1x128xf32>
    %192 = math.tanh %191 : vector<1x128xf32>
    %193 = arith.mulf %11, %192 : vector<1x128xf32>
    %194 = arith.addf %193, %14 : vector<1x128xf32>
    %195 = vector.extract_strided_slice %194 {offsets = [0, 0], sizes = [1, 32], strides = [1, 1]} : vector<1x128xf32> to vector<1x32xf32>
    %196 = vector.extract_strided_slice %194 {offsets = [0, 32], sizes = [1, 32], strides = [1, 1]} : vector<1x128xf32> to vector<1x32xf32>
    %197 = vector.extract_strided_slice %194 {offsets = [0, 64], sizes = [1, 32], strides = [1, 1]} : vector<1x128xf32> to vector<1x32xf32>
    %198 = vector.extract_strided_slice %194 {offsets = [0, 96], sizes = [1, 32], strides = [1, 1]} : vector<1x128xf32> to vector<1x32xf32>
    %199 = arith.mulf %196, %168 : vector<1x32xf32>
    %200 = arith.mulf %195, %197 : vector<1x32xf32>
    %201 = arith.addf %199, %200 : vector<1x32xf32>
    %202 = math.tanh %201 : vector<1x32xf32>
    %203 = arith.mulf %198, %202 : vector<1x32xf32>
    %204 = tpu.concatenate %203, %185 in 1 : vector<1x32xf32>, vector<1x32xf32> -> vector<1x64xf32>
    %cst_40 = arith.constant dense<0.000000e+00> : vector<1x128xf32>
    %205 = tpu.matmul %204, %1, %cst_40 {dimension_numbers = #tpu.dot_dimension_numbers<[1], [0], [0], [1], [0, 0, 1, 1], [], []>} : vector<1x64xf32>, vector<64x128xf32>, vector<1x128xf32> -> vector<1x128xf32>
    %206 = arith.addf %205, %2 : vector<1x128xf32>
    %207 = math.tanh %206 : vector<1x128xf32>
    %208 = arith.mulf %11, %207 : vector<1x128xf32>
    %209 = arith.addf %208, %14 : vector<1x128xf32>
    %210 = vector.extract_strided_slice %209 {offsets = [0, 0], sizes = [1, 32], strides = [1, 1]} : vector<1x128xf32> to vector<1x32xf32>
    %211 = vector.extract_strided_slice %209 {offsets = [0, 32], sizes = [1, 32], strides = [1, 1]} : vector<1x128xf32> to vector<1x32xf32>
    %212 = vector.extract_strided_slice %209 {offsets = [0, 64], sizes = [1, 32], strides = [1, 1]} : vector<1x128xf32> to vector<1x32xf32>
    %213 = vector.extract_strided_slice %209 {offsets = [0, 96], sizes = [1, 32], strides = [1, 1]} : vector<1x128xf32> to vector<1x32xf32>
    %214 = arith.mulf %211, %183 : vector<1x32xf32>
    %215 = arith.mulf %210, %212 : vector<1x32xf32>
    %216 = arith.addf %214, %215 : vector<1x32xf32>
    %217 = math.tanh %216 : vector<1x32xf32>
    %218 = arith.mulf %213, %217 : vector<1x32xf32>
    %219 = arith.index_cast %c5_i32 : i32 to index
    %c0_41 = arith.constant 0 : index
    %220 = vector.load %arg10[%219, %c0_41] : memref<8x32xf32, #tpu.memory_space<vmem>>, vector<1x32xf32>
    tpu.vector_store %arg10[%219, %c0_41], %218 {strides = array<i32>} : memref<8x32xf32, #tpu.memory_space<vmem>>, vector<1x32xf32>,
    %c6_i32 = arith.constant 6 : i32
    %221 = arith.index_cast %c6_i32 : i32 to index
    %c0_42 = arith.constant 0 : index
    %222 = vector.load %arg9[%221, %c0_42] : memref<8x128xf32, #tpu.memory_space<vmem>>, vector<1x128xf32>
    %cst_43 = arith.constant dense<0.000000e+00> : vector<1x128xf32>
    %223 = tpu.matmul %203, %0, %cst_43 {dimension_numbers = #tpu.dot_dimension_numbers<[1], [0], [0], [1], [0, 0, 1, 1], [], []>} : vector<1x32xf32>, vector<32x128xf32>, vector<1x128xf32> -> vector<1x128xf32>
    %224 = arith.addf %222, %223 : vector<1x128xf32>
    %225 = math.tanh %224 : vector<1x128xf32>
    %226 = arith.mulf %11, %225 : vector<1x128xf32>
    %227 = arith.addf %226, %14 : vector<1x128xf32>
    %228 = vector.extract_strided_slice %227 {offsets = [0, 0], sizes = [1, 32], strides = [1, 1]} : vector<1x128xf32> to vector<1x32xf32>
    %229 = vector.extract_strided_slice %227 {offsets = [0, 32], sizes = [1, 32], strides = [1, 1]} : vector<1x128xf32> to vector<1x32xf32>
    %230 = vector.extract_strided_slice %227 {offsets = [0, 64], sizes = [1, 32], strides = [1, 1]} : vector<1x128xf32> to vector<1x32xf32>
    %231 = vector.extract_strided_slice %227 {offsets = [0, 96], sizes = [1, 32], strides = [1, 1]} : vector<1x128xf32> to vector<1x32xf32>
    %232 = arith.mulf %229, %201 : vector<1x32xf32>
    %233 = arith.mulf %228, %230 : vector<1x32xf32>
    %234 = arith.addf %232, %233 : vector<1x32xf32>
    %235 = math.tanh %234 : vector<1x32xf32>
    %236 = arith.mulf %231, %235 : vector<1x32xf32>
    %237 = tpu.concatenate %236, %218 in 1 : vector<1x32xf32>, vector<1x32xf32> -> vector<1x64xf32>
    %cst_44 = arith.constant dense<0.000000e+00> : vector<1x128xf32>
    %238 = tpu.matmul %237, %1, %cst_44 {dimension_numbers = #tpu.dot_dimension_numbers<[1], [0], [0], [1], [0, 0, 1, 1], [], []>} : vector<1x64xf32>, vector<64x128xf32>, vector<1x128xf32> -> vector<1x128xf32>
    %239 = arith.addf %238, %2 : vector<1x128xf32>
    %240 = math.tanh %239 : vector<1x128xf32>
    %241 = arith.mulf %11, %240 : vector<1x128xf32>
    %242 = arith.addf %241, %14 : vector<1x128xf32>
    %243 = vector.extract_strided_slice %242 {offsets = [0, 0], sizes = [1, 32], strides = [1, 1]} : vector<1x128xf32> to vector<1x32xf32>
    %244 = vector.extract_strided_slice %242 {offsets = [0, 32], sizes = [1, 32], strides = [1, 1]} : vector<1x128xf32> to vector<1x32xf32>
    %245 = vector.extract_strided_slice %242 {offsets = [0, 64], sizes = [1, 32], strides = [1, 1]} : vector<1x128xf32> to vector<1x32xf32>
    %246 = vector.extract_strided_slice %242 {offsets = [0, 96], sizes = [1, 32], strides = [1, 1]} : vector<1x128xf32> to vector<1x32xf32>
    %247 = arith.mulf %244, %216 : vector<1x32xf32>
    %248 = arith.mulf %243, %245 : vector<1x32xf32>
    %249 = arith.addf %247, %248 : vector<1x32xf32>
    %250 = math.tanh %249 : vector<1x32xf32>
    %251 = arith.mulf %246, %250 : vector<1x32xf32>
    %252 = arith.index_cast %c6_i32 : i32 to index
    %c0_45 = arith.constant 0 : index
    %253 = vector.load %arg10[%252, %c0_45] : memref<8x32xf32, #tpu.memory_space<vmem>>, vector<1x32xf32>
    tpu.vector_store %arg10[%252, %c0_45], %251 {strides = array<i32>} : memref<8x32xf32, #tpu.memory_space<vmem>>, vector<1x32xf32>,
    %c7_i32 = arith.constant 7 : i32
    %254 = arith.index_cast %c7_i32 : i32 to index
    %c0_46 = arith.constant 0 : index
    %255 = vector.load %arg9[%254, %c0_46] : memref<8x128xf32, #tpu.memory_space<vmem>>, vector<1x128xf32>
    %cst_47 = arith.constant dense<0.000000e+00> : vector<1x128xf32>
    %256 = tpu.matmul %236, %0, %cst_47 {dimension_numbers = #tpu.dot_dimension_numbers<[1], [0], [0], [1], [0, 0, 1, 1], [], []>} : vector<1x32xf32>, vector<32x128xf32>, vector<1x128xf32> -> vector<1x128xf32>
    %257 = arith.addf %255, %256 : vector<1x128xf32>
    %258 = math.tanh %257 : vector<1x128xf32>
    %259 = arith.mulf %11, %258 : vector<1x128xf32>
    %260 = arith.addf %259, %14 : vector<1x128xf32>
    %261 = vector.extract_strided_slice %260 {offsets = [0, 0], sizes = [1, 32], strides = [1, 1]} : vector<1x128xf32> to vector<1x32xf32>
    %262 = vector.extract_strided_slice %260 {offsets = [0, 32], sizes = [1, 32], strides = [1, 1]} : vector<1x128xf32> to vector<1x32xf32>
    %263 = vector.extract_strided_slice %260 {offsets = [0, 64], sizes = [1, 32], strides = [1, 1]} : vector<1x128xf32> to vector<1x32xf32>
    %264 = vector.extract_strided_slice %260 {offsets = [0, 96], sizes = [1, 32], strides = [1, 1]} : vector<1x128xf32> to vector<1x32xf32>
    %265 = arith.mulf %262, %234 : vector<1x32xf32>
    %266 = arith.mulf %261, %263 : vector<1x32xf32>
    %267 = arith.addf %265, %266 : vector<1x32xf32>
    %268 = math.tanh %267 : vector<1x32xf32>
    %269 = arith.mulf %264, %268 : vector<1x32xf32>
    %270 = tpu.concatenate %269, %251 in 1 : vector<1x32xf32>, vector<1x32xf32> -> vector<1x64xf32>
    %cst_48 = arith.constant dense<0.000000e+00> : vector<1x128xf32>
    %271 = tpu.matmul %270, %1, %cst_48 {dimension_numbers = #tpu.dot_dimension_numbers<[1], [0], [0], [1], [0, 0, 1, 1], [], []>} : vector<1x64xf32>, vector<64x128xf32>, vector<1x128xf32> -> vector<1x128xf32>
    %272 = arith.addf %271, %2 : vector<1x128xf32>
    %273 = math.tanh %272 : vector<1x128xf32>
    %274 = arith.mulf %11, %273 : vector<1x128xf32>
    %275 = arith.addf %274, %14 : vector<1x128xf32>
    %276 = vector.extract_strided_slice %275 {offsets = [0, 0], sizes = [1, 32], strides = [1, 1]} : vector<1x128xf32> to vector<1x32xf32>
    %277 = vector.extract_strided_slice %275 {offsets = [0, 32], sizes = [1, 32], strides = [1, 1]} : vector<1x128xf32> to vector<1x32xf32>
    %278 = vector.extract_strided_slice %275 {offsets = [0, 64], sizes = [1, 32], strides = [1, 1]} : vector<1x128xf32> to vector<1x32xf32>
    %279 = vector.extract_strided_slice %275 {offsets = [0, 96], sizes = [1, 32], strides = [1, 1]} : vector<1x128xf32> to vector<1x32xf32>
    %280 = arith.mulf %277, %249 : vector<1x32xf32>
    %281 = arith.mulf %276, %278 : vector<1x32xf32>
    %282 = arith.addf %280, %281 : vector<1x32xf32>
    %283 = math.tanh %282 : vector<1x32xf32>
    %284 = arith.mulf %279, %283 : vector<1x32xf32>
    %285 = arith.index_cast %c7_i32 : i32 to index
    %c0_49 = arith.constant 0 : index
    %286 = vector.load %arg10[%285, %c0_49] : memref<8x32xf32, #tpu.memory_space<vmem>>, vector<1x32xf32>
    tpu.vector_store %arg10[%285, %c0_49], %284 {strides = array<i32>} : memref<8x32xf32, #tpu.memory_space<vmem>>, vector<1x32xf32>,
    %c8_i32 = arith.constant 8 : i32
    %c0_50 = arith.constant 0 : index
    %c0_51 = arith.constant 0 : index
    %287 = vector.load %arg10[%c0_50, %c0_51] : memref<8x32xf32, #tpu.memory_space<vmem>>, vector<8x32xf32>
    %c0_52 = arith.constant 0 : index
    %c0_53 = arith.constant 0 : index
    %288 = vector.load %arg6[%c0_52, %c0_53] : memref<32x1xf32, #tpu.memory_space<vmem>>, vector<32x1xf32>
    %cst_54 = arith.constant dense<0.000000e+00> : vector<8x1xf32>
    %289 = tpu.matmul %287, %288, %cst_54 {dimension_numbers = #tpu.dot_dimension_numbers<[1], [0], [0], [1], [0, 0, 1, 1], [], []>} : vector<8x32xf32>, vector<32x1xf32>, vector<8x1xf32> -> vector<8x1xf32>
    %c0_55 = arith.constant 0 : index
    %c0_56 = arith.constant 0 : index
    %290 = vector.load %arg7[%c0_55, %c0_56] : memref<1x1xf32, #tpu.memory_space<vmem>>, vector<1x1xf32>
    %291 = vector.broadcast %290 : vector<1x1xf32> to vector<8x1xf32>
    %292 = arith.addf %289, %291 : vector<8x1xf32>
    %cst_57 = arith.constant 0.000000e+00 : f32
    %293 = vector.broadcast %cst_57 : f32 to vector<8x1xf32>
    %294 = arith.maximumf %292, %293 : vector<8x1xf32>
    %c0_58 = arith.constant 0 : index
    %c0_59 = arith.constant 0 : index
    %295 = vector.load %arg8[%c0_58, %c0_59] : memref<8x1xf32, #tpu.memory_space<vmem>>, vector<8x1xf32>
    tpu.vector_store %arg8[%c0_58, %c0_59], %294 {strides = array<i32>} : memref<8x1xf32, #tpu.memory_space<vmem>>, vector<8x1xf32>,
    return
  }
}

</mosaic_0001>

<llo_original>
// kernel: lstm_forward.1
$region0: #{lstm_forward.1}
  #allocation0 [shape = 'u32[]', space=smem, size = 0x4, offset = 0x4, fixed_abs, tag = 'smem constant byte address 0x4 - core index']
  #allocation1 [shape = 'u32[72,128]{1,0:T(1,128)}', space=vmem, size = 0x9000, scoped, tag = 'internal scratch']
  #allocation2 [shape = 'f32[8,128]{1,0:T(8,128)}', space=vmem, size = 0x1000, scoped, tag = 'scratch operand']
  #allocation3 [shape = 'f32[8,32]{1,0:T(8,128)}', space=vmem, size = 0x1000, scoped, tag = 'scratch operand']
  #allocation4 [shape = 'f32[1,1]{1,0:T(1,128)S(1)}', space=vmem, size = 0x200, scoped, tag = 'scoped memory for lstm_forward.1']
  %s0 = inlined_call_operand.vmem [shape: f32[8,16], index: 0, kind: input, shape index: {}]
  %s1 = inlined_call_operand.vmem [shape: f32[16,128], index: 1, kind: input, shape index: {}]
  %s2 = inlined_call_operand.vmem [shape: f32[32,128], index: 2, kind: input, shape index: {}]
  %s3 = inlined_call_operand.vmem [shape: f32[1,128], index: 3, kind: input, shape index: {}]
  %s4 = inlined_call_operand.vmem [shape: f32[64,128], index: 4, kind: input, shape index: {}]
  %s5 = inlined_call_operand.vmem [shape: f32[1,128], index: 5, kind: input, shape index: {}]
  %s6 = inlined_call_operand.vmem [shape: f32[32,1], index: 6, kind: input, shape index: {}]
  %s7 = inlined_call_operand.<no memory space> [shape: f32[1,1], index: 7, kind: input, shape index: {}]
  %s8 = inlined_call_operand.vmem [shape: f32[8,1], index: 8, kind: output, shape index: {}]
  %s9 = sld [smem:[#allocation0]]
  $region42: #{lstm_forward.1} parent=0
    _
  %s11 = ssub.s32 1, %s9
  %s12 = scalar_select 0, %s11, %s9
  %v13 = vstv %s7
  %14 = vst [vmem:[#allocation4] sm:$0x1] %v13
  // Predicated region
  $region2: #{lstm_forward.1} parent=0 // pred_check
    _
  $region3: #{lstm_forward.1} parent=0 // pred_check_branch
    %16 = sbr.rel (0) target = $region5
  $region4: #{lstm_forward.1} parent=0 // pred_region
    _
  $region5: #{lstm_forward.1} parent=0 // pred_fallthru
    _
  // Predicated region
  $region6: #{lstm_forward.1} parent=0 // pred_check
    _
  $region7: #{lstm_forward.1} parent=0 // pred_check_branch
    %18 = sbr.rel (0) target = $region9
  $region8: #{lstm_forward.1} parent=0 // pred_region
    _
  $region9: #{lstm_forward.1} parent=0 // pred_fallthru
    _
  // Predicated region
  $region10: #{lstm_forward.1} parent=0 // pred_check
    _
  $region11: #{lstm_forward.1} parent=0 // pred_check_branch
    %20 = sbr.rel (0) target = $region13
  $region12: #{lstm_forward.1} parent=0 // pred_region
    _
  $region13: #{lstm_forward.1} parent=0 // pred_fallthru
    _
  // Predicated region
  $region14: #{lstm_forward.1} parent=0 // pred_check
    _
  $region15: #{lstm_forward.1} parent=0 // pred_check_branch
    %22 = sbr.rel (0) target = $region17
  $region16: #{lstm_forward.1} parent=0 // pred_region
    _
  $region17: #{lstm_forward.1} parent=0 // pred_fallthru
    _
  // Predicated region
  $region18: #{lstm_forward.1} parent=0 // pred_check
    _
  $region19: #{lstm_forward.1} parent=0 // pred_check_branch
    %24 = sbr.rel (0) target = $region21
  $region20: #{lstm_forward.1} parent=0 // pred_region
    _
  $region21: #{lstm_forward.1} parent=0 // pred_fallthru
    _
  // Predicated region
  $region22: #{lstm_forward.1} parent=0 // pred_check
    _
  $region23: #{lstm_forward.1} parent=0 // pred_check_branch
    %26 = sbr.rel (0) target = $region25
  $region24: #{lstm_forward.1} parent=0 // pred_region
    _
  $region25: #{lstm_forward.1} parent=0 // pred_fallthru
    _
  // Predicated region
  $region26: #{lstm_forward.1} parent=0 // pred_check
    _
  $region27: #{lstm_forward.1} parent=0 // pred_check_branch
    %28 = sbr.rel (0) target = $region29
  $region28: #{lstm_forward.1} parent=0 // pred_region
    _
  $region29: #{lstm_forward.1} parent=0 // pred_fallthru
    _
  // Predicated region
  $region30: #{lstm_forward.1} parent=0 // pred_check
    _
  $region31: #{lstm_forward.1} parent=0 // pred_check_branch
    %30 = sbr.rel (0) target = $region33
  $region32: #{lstm_forward.1} parent=0 // pred_region
    _
  $region33: #{lstm_forward.1} parent=0 // pred_fallthru
    _
  %v31 = vld [vmem:[%s2] sm:$0xff]
  %v32 = vld [vmem:[%s2 + $0x8] sm:$0xff]
  %v33 = vld [vmem:[%s2 + $0x10] sm:$0xff]
  %v34 = vld [vmem:[%s2 + $0x18] sm:$0xff]
  %v35 = vld [vmem:[%s4] sm:$0xff]
  %v36 = vld [vmem:[%s4 + $0x8] sm:$0xff]
  %v37 = vld [vmem:[%s4 + $0x10] sm:$0xff]
  %v38 = vld [vmem:[%s4 + $0x18] sm:$0xff]
  %v39 = vld [vmem:[%s4 + $0x20] sm:$0xff]
  %v40 = vld [vmem:[%s4 + $0x28] sm:$0xff]
  %v41 = vld [vmem:[%s4 + $0x30] sm:$0xff]
  %v42 = vld [vmem:[%s4 + $0x38] sm:$0xff]
  %v43 = vld [vmem:[%s5] sm:$0x1]
  %v44 = vlaneseq
  %v45 = vand.u32 %v44, 127
  %vm46 = vcmp.ge.s32.totalorder %v45, 64
  %vm47 = vcmp.lt.s32.totalorder %v45, 96
  %vm48 = vmand %vm46, %vm47
  %v49 = vsel %vm48, 1.0, 0.5
  %v50 = vsel %vm48, 0.0, 0.5
  %v51 = vld [vmem:[%s0] sm:$0xff]
  %v52 = vld [vmem:[%s1] sm:$0xff]
  %v53 = vld [vmem:[%s1 + $0x8] sm:$0xff]
  %v54 = vld [vmem:[%s3] sm:$0x1]
  %v56 = vperm.slane %v54, 0
  %vm58 = vcmask 130048
  %v60 = vsel %vm58, %v51, 0
  %62 = vmatpush.msra.mxu0 0.0
  %63 = vmatpush.msra.mxu0 0.0
  %64 = vmatpush.msra.mxu0 0.0
  %65 = vmatpush.msra.mxu0 0.0
  %66 = vmatpush.msra.mxu0 0.0
  %67 = vmatpush.msra.mxu0 0.0
  %68 = vmatpush.msra.mxu0 0.0
  %69 = vmatpush.msra.mxu0 0.0
  %70 = vmatpush.msra.mxu0 0.0
  %71 = vmatpush.msra.mxu0 0.0
  %72 = vmatpush.msra.mxu0 0.0
  %73 = vmatpush.msra.mxu0 0.0
  %74 = vmatpush.msra.mxu0 0.0
  %75 = vmatpush.msra.mxu0 0.0
  %76 = vmatpush.msra.mxu0 %v53
  %77 = vmatpush.msra.mxu0 %v52
  %78 = vmatmul.f32.gmra.mxu0 %v60
  %v79 = vpop.f32.mrf.mxu0
  %v80 = vadd.f32 %v56, %v79
  %81 = vdwg.mxu0
  %82 = vst [vmem:[#allocation2] sm:$0xff] %v80
  %v83 = vld [vmem:[#allocation2] sm:$0x1]
  %vm84 = vcmask 261120
  %v86 = vsel %vm84, 0.0, 0
  %88 = vmatpush.msra.mxu0 0.0
  %89 = vmatpush.msra.mxu0 0.0
  %90 = vmatpush.msra.mxu0 0.0
  %91 = vmatpush.msra.mxu0 0.0
  %92 = vmatpush.msra.mxu0 0.0
  %93 = vmatpush.msra.mxu0 0.0
  %94 = vmatpush.msra.mxu0 0.0
  %95 = vmatpush.msra.mxu0 0.0
  %96 = vmatpush.msra.mxu0 0.0
  %97 = vmatpush.msra.mxu0 0.0
  %98 = vmatpush.msra.mxu0 0.0
  %99 = vmatpush.msra.mxu0 0.0
  %100 = vmatpush.msra.mxu0 %v34
  %101 = vmatpush.msra.mxu0 %v33
  %102 = vmatpush.msra.mxu0 %v32
  %103 = vmatpush.msra.mxu0 %v31
  %104 = vmatmul.f32.gmra.mxu0 %v86
  %v105 = vpop.f32.mrf.mxu0
  %v106 = vadd.f32 0.0, %v105
  %107 = vdwg.mxu0
  %v108 = vadd.f32 %v83, %v106
  %v109 = vtanh.pop %v108
  %v110 = vmul.f32 %v49, %v109
  %v111 = vadd.f32 %v110, %v50
  %v112 = vmul.f32 %v111, 0.0
  %114 = vrot.lane.b32.xlu0 %v111, 64
  %v115 = vpop.permute.xlu0 %114
  %v117 = vmul.f32 %v111, %v115
  %119 = vrot.lane.b32.xlu0 %v117, 32
  %v120 = vpop.permute.xlu0 %119
  %v122 = vadd.f32 %v112, %v120
  %v123 = vtanh.pop %v122
  %125 = vrot.lane.b32.xlu0 %v123, 64
  %v126 = vpop.permute.xlu0 %125
  %v128 = vmul.f32 %v111, %v126
  %130 = vrot.lane.b32.xlu0 %v128, 32
  %v131 = vpop.permute.xlu0 %130
  %v133 = vsel %vm84, %v131, 0.0
  %vm134 = vcmask 523264
  %v136 = vsel %vm134, %v133, 0
  %138 = vmatpush.msra.mxu0 0.0
  %139 = vmatpush.msra.mxu0 0.0
  %140 = vmatpush.msra.mxu0 0.0
  %141 = vmatpush.msra.mxu0 0.0
  %142 = vmatpush.msra.mxu0 0.0
  %143 = vmatpush.msra.mxu0 0.0
  %144 = vmatpush.msra.mxu0 0.0
  %145 = vmatpush.msra.mxu0 0.0
  %146 = vmatpush.msra.mxu0 %v42
  %147 = vmatpush.msra.mxu0 %v41
  %148 = vmatpush.msra.mxu0 %v40
  %149 = vmatpush.msra.mxu0 %v39
  %150 = vmatpush.msra.mxu0 %v38
  %151 = vmatpush.msra.mxu0 %v37
  %152 = vmatpush.msra.mxu0 %v36
  %153 = vmatpush.msra.mxu0 %v35
  %154 = vmatmul.f32.gmra.mxu0 %v136
  %v155 = vpop.f32.mrf.mxu0
  %v156 = vadd.f32 %v43, %v155
  %157 = vdwg.mxu0
  %v158 = vtanh.pop %v156
  %v159 = vmul.f32 %v49, %v158
  %v160 = vadd.f32 %v159, %v50
  %v161 = vmul.f32 %v160, 0.0
  %163 = vrot.lane.b32.xlu0 %v160, 64
  %v164 = vpop.permute.xlu0 %163
  %v166 = vmul.f32 %v160, %v164
  %168 = vrot.lane.b32.xlu0 %v166, 32
  %v169 = vpop.permute.xlu0 %168
  %v171 = vadd.f32 %v161, %v169
  %v172 = vtanh.pop %v171
  %174 = vrot.lane.b32.xlu0 %v172, 64
  %v175 = vpop.permute.xlu0 %174
  %v177 = vmul.f32 %v160, %v175
  %179 = vrot.lane.b32.xlu0 %v177, 32
  %v180 = vpop.permute.xlu0 %179
  %vm182 = vcmask 253952
  %183 = vst.msk [vmem:[#allocation3] sm:$0x1] %vm182, %v180
  %v184 = vld [vmem:[#allocation2 + $0x1] sm:$0x1]
  %v185 = vsel %vm84, %v131, 0
  %187 = vmatpush.msra.mxu0 0.0
  %188 = vmatpush.msra.mxu0 0.0
  %189 = vmatpush.msra.mxu0 0.0
  %190 = vmatpush.msra.mxu0 0.0
  %191 = vmatpush.msra.mxu0 0.0
  %192 = vmatpush.msra.mxu0 0.0
  %193 = vmatpush.msra.mxu0 0.0
  %194 = vmatpush.msra.mxu0 0.0
  %195 = vmatpush.msra.mxu0 0.0
  %196 = vmatpush.msra.mxu0 0.0
  %197 = vmatpush.msra.mxu0 0.0
  %198 = vmatpush.msra.mxu0 0.0
  %199 = vmatpush.msra.mxu0 %v34
  %200 = vmatpush.msra.mxu0 %v33
  %201 = vmatpush.msra.mxu0 %v32
  %202 = vmatpush.msra.mxu0 %v31
  %203 = vmatmul.f32.gmra.mxu0 %v185
  %v204 = vpop.f32.mrf.mxu0
  %v205 = vadd.f32 0.0, %v204
  %206 = vdwg.mxu0
  %v207 = vadd.f32 %v184, %v205
  %v208 = vtanh.pop %v207
  %v209 = vmul.f32 %v49, %v208
  %v210 = vadd.f32 %v209, %v50
  %v211 = vmul.f32 %v210, %v122
  %213 = vrot.lane.b32.xlu0 %v210, 64
  %v214 = vpop.permute.xlu0 %213
  %v216 = vmul.f32 %v210, %v214
  %218 = vrot.lane.b32.xlu0 %v216, 32
  %v219 = vpop.permute.xlu0 %218
  %v221 = vadd.f32 %v211, %v219
  %v222 = vtanh.pop %v221
  %224 = vrot.lane.b32.xlu0 %v222, 64
  %v225 = vpop.permute.xlu0 %224
  %v227 = vmul.f32 %v210, %v225
  %229 = vrot.lane.b32.xlu0 %v227, 32
  %v230 = vpop.permute.xlu0 %229
  %232 = vrot.lane.b32.xlu0 %v177, 64
  %v233 = vpop.permute.xlu0 %232
  %v235 = vsel %vm84, %v230, %v233
  %v237 = vsel %vm134, %v235, 0
  %239 = vmatpush.msra.mxu0 0.0
  %240 = vmatpush.msra.mxu0 0.0
  %241 = vmatpush.msra.mxu0 0.0
  %242 = vmatpush.msra.mxu0 0.0
  %243 = vmatpush.msra.mxu0 0.0
  %244 = vmatpush.msra.mxu0 0.0
  %245 = vmatpush.msra.mxu0 0.0
  %246 = vmatpush.msra.mxu0 0.0
  %247 = vmatpush.msra.mxu0 %v42
  %248 = vmatpush.msra.mxu0 %v41
  %249 = vmatpush.msra.mxu0 %v40
  %250 = vmatpush.msra.mxu0 %v39
  %251 = vmatpush.msra.mxu0 %v38
  %252 = vmatpush.msra.mxu0 %v37
  %253 = vmatpush.msra.mxu0 %v36
  %254 = vmatpush.msra.mxu0 %v35
  %255 = vmatmul.f32.gmra.mxu0 %v237
  %v256 = vpop.f32.mrf.mxu0
  %v257 = vadd.f32 %v43, %v256
  %258 = vdwg.mxu0
  %v259 = vtanh.pop %v257
  %v260 = vmul.f32 %v49, %v259
  %v261 = vadd.f32 %v260, %v50
  %v262 = vmul.f32 %v261, %v171
  %264 = vrot.lane.b32.xlu0 %v261, 64
  %v265 = vpop.permute.xlu0 %264
  %v267 = vmul.f32 %v261, %v265
  %269 = vrot.lane.b32.xlu0 %v267, 32
  %v270 = vpop.permute.xlu0 %269
  %v272 = vadd.f32 %v262, %v270
  %v273 = vtanh.pop %v272
  %275 = vrot.lane.b32.xlu0 %v273, 64
  %v276 = vpop.permute.xlu0 %275
  %v278 = vmul.f32 %v261, %v276
  %280 = vrot.lane.b32.xlu0 %v278, 32
  %v281 = vpop.permute.xlu0 %280
  %283 = vst.msk [vmem:[#allocation3 + $0x1] sm:$0x1] %vm182, %v281
  %v284 = vld [vmem:[#allocation2 + $0x2] sm:$0x1]
  %v285 = vsel %vm84, %v230, 0
  %287 = vmatpush.msra.mxu0 0.0
  %288 = vmatpush.msra.mxu0 0.0
  %289 = vmatpush.msra.mxu0 0.0
  %290 = vmatpush.msra.mxu0 0.0
  %291 = vmatpush.msra.mxu0 0.0
  %292 = vmatpush.msra.mxu0 0.0
  %293 = vmatpush.msra.mxu0 0.0
  %294 = vmatpush.msra.mxu0 0.0
  %295 = vmatpush.msra.mxu0 0.0
  %296 = vmatpush.msra.mxu0 0.0
  %297 = vmatpush.msra.mxu0 0.0
  %298 = vmatpush.msra.mxu0 0.0
  %299 = vmatpush.msra.mxu0 %v34
  %300 = vmatpush.msra.mxu0 %v33
  %301 = vmatpush.msra.mxu0 %v32
  %302 = vmatpush.msra.mxu0 %v31
  %303 = vmatmul.f32.gmra.mxu0 %v285
  %v304 = vpop.f32.mrf.mxu0
  %v305 = vadd.f32 0.0, %v304
  %306 = vdwg.mxu0
  %v307 = vadd.f32 %v284, %v305
  %v308 = vtanh.pop %v307
  %v309 = vmul.f32 %v49, %v308
  %v310 = vadd.f32 %v309, %v50
  %v311 = vmul.f32 %v310, %v221
  %313 = vrot.lane.b32.xlu0 %v310, 64
  %v314 = vpop.permute.xlu0 %313
  %v316 = vmul.f32 %v310, %v314
  %318 = vrot.lane.b32.xlu0 %v316, 32
  %v319 = vpop.permute.xlu0 %318
  %v321 = vadd.f32 %v311, %v319
  %v322 = vtanh.pop %v321
  %324 = vrot.lane.b32.xlu0 %v322, 64
  %v325 = vpop.permute.xlu0 %324
  %v327 = vmul.f32 %v310, %v325
  %329 = vrot.lane.b32.xlu0 %v327, 32
  %v330 = vpop.permute.xlu0 %329
  %332 = vrot.lane.b32.xlu0 %v278, 64
  %v333 = vpop.permute.xlu0 %332
  %v335 = vsel %vm84, %v330, %v333
  %v337 = vsel %vm134, %v335, 0
  %339 = vmatpush.msra.mxu0 0.0
  %340 = vmatpush.msra.mxu0 0.0
  %341 = vmatpush.msra.mxu0 0.0
  %342 = vmatpush.msra.mxu0 0.0
  %343 = vmatpush.msra.mxu0 0.0
  %344 = vmatpush.msra.mxu0 0.0
  %345 = vmatpush.msra.mxu0 0.0
  %346 = vmatpush.msra.mxu0 0.0
  %347 = vmatpush.msra.mxu0 %v42
  %348 = vmatpush.msra.mxu0 %v41
  %349 = vmatpush.msra.mxu0 %v40
  %350 = vmatpush.msra.mxu0 %v39
  %351 = vmatpush.msra.mxu0 %v38
  %352 = vmatpush.msra.mxu0 %v37
  %353 = vmatpush.msra.mxu0 %v36
  %354 = vmatpush.msra.mxu0 %v35
  %355 = vmatmul.f32.gmra.mxu0 %v337
  %v356 = vpop.f32.mrf.mxu0
  %v357 = vadd.f32 %v43, %v356
  %358 = vdwg.mxu0
  %v359 = vtanh.pop %v357
  %v360 = vmul.f32 %v49, %v359
  %v361 = vadd.f32 %v360, %v50
  %v362 = vmul.f32 %v361, %v272
  %364 = vrot.lane.b32.xlu0 %v361, 64
  %v365 = vpop.permute.xlu0 %364
  %v367 = vmul.f32 %v361, %v365
  %369 = vrot.lane.b32.xlu0 %v367, 32
  %v370 = vpop.permute.xlu0 %369
  %v372 = vadd.f32 %v362, %v370
  %v373 = vtanh.pop %v372
  %375 = vrot.lane.b32.xlu0 %v373, 64
  %v376 = vpop.permute.xlu0 %375
  %v378 = vmul.f32 %v361, %v376
  %380 = vrot.lane.b32.xlu0 %v378, 32
  %v381 = vpop.permute.xlu0 %380
  %383 = vst.msk [vmem:[#allocation3 + $0x2] sm:$0x1] %vm182, %v381
  %v384 = vld [vmem:[#allocation2 + $0x3] sm:$0x1]
  %v385 = vsel %vm84, %v330, 0
  %387 = vmatpush.msra.mxu0 0.0
  %388 = vmatpush.msra.mxu0 0.0
  %389 = vmatpush.msra.mxu0 0.0
  %390 = vmatpush.msra.mxu0 0.0
  %391 = vmatpush.msra.mxu0 0.0
  %392 = vmatpush.msra.mxu0 0.0
  %393 = vmatpush.msra.mxu0 0.0
  %394 = vmatpush.msra.mxu0 0.0
  %395 = vmatpush.msra.mxu0 0.0
  %396 = vmatpush.msra.mxu0 0.0
  %397 = vmatpush.msra.mxu0 0.0
  %398 = vmatpush.msra.mxu0 0.0
  %399 = vmatpush.msra.mxu0 %v34
  %400 = vmatpush.msra.mxu0 %v33
  %401 = vmatpush.msra.mxu0 %v32
  %402 = vmatpush.msra.mxu0 %v31
  %403 = vmatmul.f32.gmra.mxu0 %v385
  %v404 = vpop.f32.mrf.mxu0
  %v405 = vadd.f32 0.0, %v404
  %406 = vdwg.mxu0
  %v407 = vadd.f32 %v384, %v405
  %v408 = vtanh.pop %v407
  %v409 = vmul.f32 %v49, %v408
  %v410 = vadd.f32 %v409, %v50
  %v411 = vmul.f32 %v410, %v321
  %413 = vrot.lane.b32.xlu0 %v410, 64
  %v414 = vpop.permute.xlu0 %413
  %v416 = vmul.f32 %v410, %v414
  %418 = vrot.lane.b32.xlu0 %v416, 32
  %v419 = vpop.permute.xlu0 %418
  %v421 = vadd.f32 %v411, %v419
  %v422 = vtanh.pop %v421
  %424 = vrot.lane.b32.xlu0 %v422, 64
  %v425 = vpop.permute.xlu0 %424
  %v427 = vmul.f32 %v410, %v425
  %429 = vrot.lane.b32.xlu0 %v427, 32
  %v430 = vpop.permute.xlu0 %429
  %432 = vrot.lane.b32.xlu0 %v378, 64
  %v433 = vpop.permute.xlu0 %432
  %v435 = vsel %vm84, %v430, %v433
  %v437 = vsel %vm134, %v435, 0
  %439 = vmatpush.msra.mxu0 0.0
  %440 = vmatpush.msra.mxu0 0.0
  %441 = vmatpush.msra.mxu0 0.0
  %442 = vmatpush.msra.mxu0 0.0
  %443 = vmatpush.msra.mxu0 0.0
  %444 = vmatpush.msra.mxu0 0.0
  %445 = vmatpush.msra.mxu0 0.0
  %446 = vmatpush.msra.mxu0 0.0
  %447 = vmatpush.msra.mxu0 %v42
  %448 = vmatpush.msra.mxu0 %v41
  %449 = vmatpush.msra.mxu0 %v40
  %450 = vmatpush.msra.mxu0 %v39
  %451 = vmatpush.msra.mxu0 %v38
  %452 = vmatpush.msra.mxu0 %v37
  %453 = vmatpush.msra.mxu0 %v36
  %454 = vmatpush.msra.mxu0 %v35
  %455 = vmatmul.f32.gmra.mxu0 %v437
  %v456 = vpop.f32.mrf.mxu0
  %v457 = vadd.f32 %v43, %v456
  %458 = vdwg.mxu0
  %v459 = vtanh.pop %v457
  %v460 = vmul.f32 %v49, %v459
  %v461 = vadd.f32 %v460, %v50
  %v462 = vmul.f32 %v461, %v372
  %464 = vrot.lane.b32.xlu0 %v461, 64
  %v465 = vpop.permute.xlu0 %464
  %v467 = vmul.f32 %v461, %v465
  %469 = vrot.lane.b32.xlu0 %v467, 32
  %v470 = vpop.permute.xlu0 %469
  %v472 = vadd.f32 %v462, %v470
  %v473 = vtanh.pop %v472
  %475 = vrot.lane.b32.xlu0 %v473, 64
  %v476 = vpop.permute.xlu0 %475
  %v478 = vmul.f32 %v461, %v476
  %480 = vrot.lane.b32.xlu0 %v478, 32
  %v481 = vpop.permute.xlu0 %480
  %483 = vst.msk [vmem:[#allocation3 + $0x3] sm:$0x1] %vm182, %v481
  %v484 = vld [vmem:[#allocation2 + $0x4] sm:$0x1]
  %v485 = vsel %vm84, %v430, 0
  %487 = vmatpush.msra.mxu0 0.0
  %488 = vmatpush.msra.mxu0 0.0
  %489 = vmatpush.msra.mxu0 0.0
  %490 = vmatpush.msra.mxu0 0.0
  %491 = vmatpush.msra.mxu0 0.0
  %492 = vmatpush.msra.mxu0 0.0
  %493 = vmatpush.msra.mxu0 0.0
  %494 = vmatpush.msra.mxu0 0.0
  %495 = vmatpush.msra.mxu0 0.0
  %496 = vmatpush.msra.mxu0 0.0
  %497 = vmatpush.msra.mxu0 0.0
  %498 = vmatpush.msra.mxu0 0.0
  %499 = vmatpush.msra.mxu0 %v34
  %500 = vmatpush.msra.mxu0 %v33
  %501 = vmatpush.msra.mxu0 %v32
  %502 = vmatpush.msra.mxu0 %v31
  %503 = vmatmul.f32.gmra.mxu0 %v485
  %v504 = vpop.f32.mrf.mxu0
  %v505 = vadd.f32 0.0, %v504
  %506 = vdwg.mxu0
  %v507 = vadd.f32 %v484, %v505
  %v508 = vtanh.pop %v507
  %v509 = vmul.f32 %v49, %v508
  %v510 = vadd.f32 %v509, %v50
  %v511 = vmul.f32 %v510, %v421
  %513 = vrot.lane.b32.xlu0 %v510, 64
  %v514 = vpop.permute.xlu0 %513
  %v516 = vmul.f32 %v510, %v514
  %518 = vrot.lane.b32.xlu0 %v516, 32
  %v519 = vpop.permute.xlu0 %518
  %v521 = vadd.f32 %v511, %v519
  %v522 = vtanh.pop %v521
  %524 = vrot.lane.b32.xlu0 %v522, 64
  %v525 = vpop.permute.xlu0 %524
  %v527 = vmul.f32 %v510, %v525
  %529 = vrot.lane.b32.xlu0 %v527, 32
  %v530 = vpop.permute.xlu0 %529
  %532 = vrot.lane.b32.xlu0 %v478, 64
  %v533 = vpop.permute.xlu0 %532
  %v535 = vsel %vm84, %v530, %v533
  %v537 = vsel %vm134, %v535, 0
  %539 = vmatpush.msra.mxu0 0.0
  %540 = vmatpush.msra.mxu0 0.0
  %541 = vmatpush.msra.mxu0 0.0
  %542 = vmatpush.msra.mxu0 0.0
  %543 = vmatpush.msra.mxu0 0.0
  %544 = vmatpush.msra.mxu0 0.0
  %545 = vmatpush.msra.mxu0 0.0
  %546 = vmatpush.msra.mxu0 0.0
  %547 = vmatpush.msra.mxu0 %v42
  %548 = vmatpush.msra.mxu0 %v41
  %549 = vmatpush.msra.mxu0 %v40
  %550 = vmatpush.msra.mxu0 %v39
  %551 = vmatpush.msra.mxu0 %v38
  %552 = vmatpush.msra.mxu0 %v37
  %553 = vmatpush.msra.mxu0 %v36
  %554 = vmatpush.msra.mxu0 %v35
  %555 = vmatmul.f32.gmra.mxu0 %v537
  %v556 = vpop.f32.mrf.mxu0
  %v557 = vadd.f32 %v43, %v556
  %558 = vdwg.mxu0
  %v559 = vtanh.pop %v557
  %v560 = vmul.f32 %v49, %v559
  %v561 = vadd.f32 %v560, %v50
  %v562 = vmul.f32 %v561, %v472
  %564 = vrot.lane.b32.xlu0 %v561, 64
  %v565 = vpop.permute.xlu0 %564
  %v567 = vmul.f32 %v561, %v565
  %569 = vrot.lane.b32.xlu0 %v567, 32
  %v570 = vpop.permute.xlu0 %569
  %v572 = vadd.f32 %v562, %v570
  %v573 = vtanh.pop %v572
  %575 = vrot.lane.b32.xlu0 %v573, 64
  %v576 = vpop.permute.xlu0 %575
  %v578 = vmul.f32 %v561, %v576
  %580 = vrot.lane.b32.xlu0 %v578, 32
  %v581 = vpop.permute.xlu0 %580
  %583 = vst.msk [vmem:[#allocation3 + $0x4] sm:$0x1] %vm182, %v581
  %v584 = vld [vmem:[#allocation2 + $0x5] sm:$0x1]
  %v585 = vsel %vm84, %v530, 0
  %587 = vmatpush.msra.mxu0 0.0
  %588 = vmatpush.msra.mxu0 0.0
  %589 = vmatpush.msra.mxu0 0.0
  %590 = vmatpush.msra.mxu0 0.0
  %591 = vmatpush.msra.mxu0 0.0
  %592 = vmatpush.msra.mxu0 0.0
  %593 = vmatpush.msra.mxu0 0.0
  %594 = vmatpush.msra.mxu0 0.0
  %595 = vmatpush.msra.mxu0 0.0
  %596 = vmatpush.msra.mxu0 0.0
  %597 = vmatpush.msra.mxu0 0.0
  %598 = vmatpush.msra.mxu0 0.0
  %599 = vmatpush.msra.mxu0 %v34
  %600 = vmatpush.msra.mxu0 %v33
  %601 = vmatpush.msra.mxu0 %v32
  %602 = vmatpush.msra.mxu0 %v31
  %603 = vmatmul.f32.gmra.mxu0 %v585
  %v604 = vpop.f32.mrf.mxu0
  %v605 = vadd.f32 0.0, %v604
  %606 = vdwg.mxu0
  %v607 = vadd.f32 %v584, %v605
  %v608 = vtanh.pop %v607
  %v609 = vmul.f32 %v49, %v608
  %v610 = vadd.f32 %v609, %v50
  %v611 = vmul.f32 %v610, %v521
  %613 = vrot.lane.b32.xlu0 %v610, 64
  %v614 = vpop.permute.xlu0 %613
  %v616 = vmul.f32 %v610, %v614
  %618 = vrot.lane.b32.xlu0 %v616, 32
  %v619 = vpop.permute.xlu0 %618
  %v621 = vadd.f32 %v611, %v619
  %v622 = vtanh.pop %v621
  %624 = vrot.lane.b32.xlu0 %v622, 64
  %v625 = vpop.permute.xlu0 %624
  %v627 = vmul.f32 %v610, %v625
  %629 = vrot.lane.b32.xlu0 %v627, 32
  %v630 = vpop.permute.xlu0 %629
  %632 = vrot.lane.b32.xlu0 %v578, 64
  %v633 = vpop.permute.xlu0 %632
  %v635 = vsel %vm84, %v630, %v633
  %v637 = vsel %vm134, %v635, 0
  %639 = vmatpush.msra.mxu0 0.0
  %640 = vmatpush.msra.mxu0 0.0
  %641 = vmatpush.msra.mxu0 0.0
  %642 = vmatpush.msra.mxu0 0.0
  %643 = vmatpush.msra.mxu0 0.0
  %644 = vmatpush.msra.mxu0 0.0
  %645 = vmatpush.msra.mxu0 0.0
  %646 = vmatpush.msra.mxu0 0.0
  %647 = vmatpush.msra.mxu0 %v42
  %648 = vmatpush.msra.mxu0 %v41
  %649 = vmatpush.msra.mxu0 %v40
  %650 = vmatpush.msra.mxu0 %v39
  %651 = vmatpush.msra.mxu0 %v38
  %652 = vmatpush.msra.mxu0 %v37
  %653 = vmatpush.msra.mxu0 %v36
  %654 = vmatpush.msra.mxu0 %v35
  %655 = vmatmul.f32.gmra.mxu0 %v637
  %v656 = vpop.f32.mrf.mxu0
  %v657 = vadd.f32 %v43, %v656
  %658 = vdwg.mxu0
  %v659 = vtanh.pop %v657
  %v660 = vmul.f32 %v49, %v659
  %v661 = vadd.f32 %v660, %v50
  %v662 = vmul.f32 %v661, %v572
  %664 = vrot.lane.b32.xlu0 %v661, 64
  %v665 = vpop.permute.xlu0 %664
  %v667 = vmul.f32 %v661, %v665
  %669 = vrot.lane.b32.xlu0 %v667, 32
  %v670 = vpop.permute.xlu0 %669
  %v672 = vadd.f32 %v662, %v670
  %v673 = vtanh.pop %v672
  %675 = vrot.lane.b32.xlu0 %v673, 64
  %v676 = vpop.permute.xlu0 %675
  %v678 = vmul.f32 %v661, %v676
  %680 = vrot.lane.b32.xlu0 %v678, 32
  %v681 = vpop.permute.xlu0 %680
  %683 = vst.msk [vmem:[#allocation3 + $0x5] sm:$0x1] %vm182, %v681
  %v684 = vld [vmem:[#allocation2 + $0x6] sm:$0x1]
  %v685 = vsel %vm84, %v630, 0
  %687 = vmatpush.msra.mxu0 0.0
  %688 = vmatpush.msra.mxu0 0.0
  %689 = vmatpush.msra.mxu0 0.0
  %690 = vmatpush.msra.mxu0 0.0
  %691 = vmatpush.msra.mxu0 0.0
  %692 = vmatpush.msra.mxu0 0.0
  %693 = vmatpush.msra.mxu0 0.0
  %694 = vmatpush.msra.mxu0 0.0
  %695 = vmatpush.msra.mxu0 0.0
  %696 = vmatpush.msra.mxu0 0.0
  %697 = vmatpush.msra.mxu0 0.0
  %698 = vmatpush.msra.mxu0 0.0
  %699 = vmatpush.msra.mxu0 %v34
  %700 = vmatpush.msra.mxu0 %v33
  %701 = vmatpush.msra.mxu0 %v32
  %702 = vmatpush.msra.mxu0 %v31
  %703 = vmatmul.f32.gmra.mxu0 %v685
  %v704 = vpop.f32.mrf.mxu0
  %v705 = vadd.f32 0.0, %v704
  %706 = vdwg.mxu0
  %v707 = vadd.f32 %v684, %v705
  %v708 = vtanh.pop %v707
  %v709 = vmul.f32 %v49, %v708
  %v710 = vadd.f32 %v709, %v50
  %v711 = vmul.f32 %v710, %v621
  %713 = vrot.lane.b32.xlu0 %v710, 64
  %v714 = vpop.permute.xlu0 %713
  %v716 = vmul.f32 %v710, %v714
  %718 = vrot.lane.b32.xlu0 %v716, 32
  %v719 = vpop.permute.xlu0 %718
  %v721 = vadd.f32 %v711, %v719
  %v722 = vtanh.pop %v721
  %724 = vrot.lane.b32.xlu0 %v722, 64
  %v725 = vpop.permute.xlu0 %724
  %v727 = vmul.f32 %v710, %v725
  %729 = vrot.lane.b32.xlu0 %v727, 32
  %v730 = vpop.permute.xlu0 %729
  %732 = vrot.lane.b32.xlu0 %v678, 64
  %v733 = vpop.permute.xlu0 %732
  %v735 = vsel %vm84, %v730, %v733
  %v737 = vsel %vm134, %v735, 0
  %739 = vmatpush.msra.mxu0 0.0
  %740 = vmatpush.msra.mxu0 0.0
  %741 = vmatpush.msra.mxu0 0.0
  %742 = vmatpush.msra.mxu0 0.0
  %743 = vmatpush.msra.mxu0 0.0
  %744 = vmatpush.msra.mxu0 0.0
  %745 = vmatpush.msra.mxu0 0.0
  %746 = vmatpush.msra.mxu0 0.0
  %747 = vmatpush.msra.mxu0 %v42
  %748 = vmatpush.msra.mxu0 %v41
  %749 = vmatpush.msra.mxu0 %v40
  %750 = vmatpush.msra.mxu0 %v39
  %751 = vmatpush.msra.mxu0 %v38
  %752 = vmatpush.msra.mxu0 %v37
  %753 = vmatpush.msra.mxu0 %v36
  %754 = vmatpush.msra.mxu0 %v35
  %755 = vmatmul.f32.gmra.mxu0 %v737
  %v756 = vpop.f32.mrf.mxu0
  %v757 = vadd.f32 %v43, %v756
  %758 = vdwg.mxu0
  %v759 = vtanh.pop %v757
  %v760 = vmul.f32 %v49, %v759
  %v761 = vadd.f32 %v760, %v50
  %v762 = vmul.f32 %v761, %v672
  %764 = vrot.lane.b32.xlu0 %v761, 64
  %v765 = vpop.permute.xlu0 %764
  %v767 = vmul.f32 %v761, %v765
  %769 = vrot.lane.b32.xlu0 %v767, 32
  %v770 = vpop.permute.xlu0 %769
  %v772 = vadd.f32 %v762, %v770
  %v773 = vtanh.pop %v772
  %775 = vrot.lane.b32.xlu0 %v773, 64
  %v776 = vpop.permute.xlu0 %775
  %v778 = vmul.f32 %v761, %v776
  %780 = vrot.lane.b32.xlu0 %v778, 32
  %v781 = vpop.permute.xlu0 %780
  %783 = vst.msk [vmem:[#allocation3 + $0x6] sm:$0x1] %vm182, %v781
  %v784 = vld [vmem:[#allocation2 + $0x7] sm:$0x1]
  %v785 = vsel %vm84, %v730, 0
  %787 = vmatpush.msra.mxu0 0.0
  %788 = vmatpush.msra.mxu0 0.0
  %789 = vmatpush.msra.mxu0 0.0
  %790 = vmatpush.msra.mxu0 0.0
  %791 = vmatpush.msra.mxu0 0.0
  %792 = vmatpush.msra.mxu0 0.0
  %793 = vmatpush.msra.mxu0 0.0
  %794 = vmatpush.msra.mxu0 0.0
  %795 = vmatpush.msra.mxu0 0.0
  %796 = vmatpush.msra.mxu0 0.0
  %797 = vmatpush.msra.mxu0 0.0
  %798 = vmatpush.msra.mxu0 0.0
  %799 = vmatpush.msra.mxu0 %v34
  %800 = vmatpush.msra.mxu0 %v33
  %801 = vmatpush.msra.mxu0 %v32
  %802 = vmatpush.msra.mxu0 %v31
  %803 = vmatmul.f32.gmra.mxu0 %v785
  %v804 = vpop.f32.mrf.mxu0
  %v805 = vadd.f32 0.0, %v804
  %806 = vdwg.mxu0
  %v807 = vadd.f32 %v784, %v805
  %v808 = vtanh.pop %v807
  %v809 = vmul.f32 %v49, %v808
  %v810 = vadd.f32 %v809, %v50
  %v811 = vmul.f32 %v810, %v721
  %813 = vrot.lane.b32.xlu0 %v810, 64
  %v814 = vpop.permute.xlu0 %813
  %v816 = vmul.f32 %v810, %v814
  %818 = vrot.lane.b32.xlu0 %v816, 32
  %v819 = vpop.permute.xlu0 %818
  %v821 = vadd.f32 %v811, %v819
  %v822 = vtanh.pop %v821
  %824 = vrot.lane.b32.xlu0 %v822, 64
  %v825 = vpop.permute.xlu0 %824
  %v827 = vmul.f32 %v810, %v825
  %829 = vrot.lane.b32.xlu0 %v827, 32
  %v830 = vpop.permute.xlu0 %829
  %832 = vrot.lane.b32.xlu0 %v778, 64
  %v833 = vpop.permute.xlu0 %832
  %v835 = vsel %vm84, %v830, %v833
  %v837 = vsel %vm134, %v835, 0
  %839 = vmatpush.msra.mxu0 0.0
  %840 = vmatpush.msra.mxu0 0.0
  %841 = vmatpush.msra.mxu0 0.0
  %842 = vmatpush.msra.mxu0 0.0
  %843 = vmatpush.msra.mxu0 0.0
  %844 = vmatpush.msra.mxu0 0.0
  %845 = vmatpush.msra.mxu0 0.0
  %846 = vmatpush.msra.mxu0 0.0
  %847 = vmatpush.msra.mxu0 %v42
  %848 = vmatpush.msra.mxu0 %v41
  %849 = vmatpush.msra.mxu0 %v40
  %850 = vmatpush.msra.mxu0 %v39
  %851 = vmatpush.msra.mxu0 %v38
  %852 = vmatpush.msra.mxu0 %v37
  %853 = vmatpush.msra.mxu0 %v36
  %854 = vmatpush.msra.mxu0 %v35
  %855 = vmatmul.f32.gmra.mxu0 %v837
  %v856 = vpop.f32.mrf.mxu0
  %v857 = vadd.f32 %v43, %v856
  %858 = vdwg.mxu0
  %v859 = vtanh.pop %v857
  %v860 = vmul.f32 %v49, %v859
  %v861 = vadd.f32 %v860, %v50
  %v862 = vmul.f32 %v861, %v772
  %864 = vrot.lane.b32.xlu0 %v861, 64
  %v865 = vpop.permute.xlu0 %864
  %v867 = vmul.f32 %v861, %v865
  %869 = vrot.lane.b32.xlu0 %v867, 32
  %v870 = vpop.permute.xlu0 %869
  %v872 = vadd.f32 %v862, %v870
  %v873 = vtanh.pop %v872
  %875 = vrot.lane.b32.xlu0 %v873, 64
  %v876 = vpop.permute.xlu0 %875
  %v878 = vmul.f32 %v861, %v876
  %880 = vrot.lane.b32.xlu0 %v878, 32
  %v881 = vpop.permute.xlu0 %880
  %883 = vst.msk [vmem:[#allocation3 + $0x7] sm:$0x1] %vm182, %v881
  %v884 = vld [vmem:[#allocation3] sm:$0xff]
  %v885 = vld [vmem:[%s6] sm:$0xff]
  %v886 = vld [vmem:[%s6 + $0x8] sm:$0xff]
  %v887 = vld [vmem:[%s6 + $0x10] sm:$0xff]
  %v888 = vld [vmem:[%s6 + $0x18] sm:$0xff]
  %v889 = vld [vmem:[#allocation4] sm:$0x1]
  %v891 = vperm.slane %v889, 0
  %v894 = vsel %vm84, %v884, 0
  %896 = vmatpush.msra.mxu0 0.0
  %897 = vmatpush.msra.mxu0 0.0
  %898 = vmatpush.msra.mxu0 0.0
  %899 = vmatpush.msra.mxu0 0.0
  %900 = vmatpush.msra.mxu0 0.0
  %901 = vmatpush.msra.mxu0 0.0
  %902 = vmatpush.msra.mxu0 0.0
  %903 = vmatpush.msra.mxu0 0.0
  %904 = vmatpush.msra.mxu0 0.0
  %905 = vmatpush.msra.mxu0 0.0
  %906 = vmatpush.msra.mxu0 0.0
  %907 = vmatpush.msra.mxu0 0.0
  %908 = vmatpush.msra.mxu0 %v888
  %909 = vmatpush.msra.mxu0 %v887
  %910 = vmatpush.msra.mxu0 %v886
  %911 = vmatpush.msra.mxu0 %v885
  %912 = vmatmul.f32.gmra.mxu0 %v894
  %v913 = vpop.f32.mrf.mxu0
  %v914 = vadd.f32 %v891, %v913
  %915 = vdwg.mxu0
  %v916 = vmax.f32 %v914, 0.0
  %vm917 = vcmask 7168
  %918 = vst.msk [vmem:[%s8] sm:$0xff] %vm917, %v916
  // Predicated region
  $region34: #{lstm_forward.1} parent=0 // pred_check
    _
  $region35: #{lstm_forward.1} parent=0 // pred_check_branch
    %920 = sbr.rel (0) target = $region37
  $region36: #{lstm_forward.1} parent=0 // pred_region
    _
  $region37: #{lstm_forward.1} parent=0 // pred_fallthru
    _
  // Predicated region
  $region38: #{lstm_forward.1} parent=0 // pred_check
    _
  $region39: #{lstm_forward.1} parent=0 // pred_check_branch
    %922 = sbr.rel (0) target = $region41
  $region40: #{lstm_forward.1} parent=0 // pred_region
    _
  $region41: #{lstm_forward.1} parent=0 // pred_fallthru
    _

</llo_original>
